<compile_context>
chip_gen: v5e
topology: v5e:2x2
jax: 0.10.0
libtpu: 0.0.40
codegen_flags: <defaults>
</compile_context>

<pallas_src>
import functools

import jax
import jax.numpy as jnp
from jax.experimental import pallas as pl
from jax.experimental.pallas import tpu as pltpu


def _lstm_classifier_kernel(x_ref, wih_ref, whh_ref, b_ref,
                            w1_ref, b1_ref, w2_ref, b2_ref,
                            out_ref, hbuf_ref, *, seq_len, hidden):
    """Whole forward pass, resident in VMEM.

    x_ref   : (T*BP, F)   f32, time-major, batch padded to BP (multiple of 8)
    wih_ref : (F, 4H)     f32  (= W_ih^T, PyTorch gate order i,f,g,o)
    whh_ref : (H, 4H)     bf16 (= W_hh^T) -- serial-chain MXU operand
    b_ref   : (1, 4H)     f32  (= b_ih + b_hh)
    w1_ref  : (T*H, 256)  bf16 (= W1^T)
    b1_ref  : (1, 256)    f32
    w2_ref  : (256, L)    f32  (= W2^T)
    b2_ref  : (1, L)      f32
    out_ref : (BP, L)     f32
    hbuf_ref: (BP, T*H)   f32 VMEM scratch holding relu(h_t) taps
    """
    T = seq_len
    H = hidden
    BP = x_ref.shape[0] // T

    whh = whh_ref[...]                       # (H, 4H) bf16, one weight load
    bias = b_ref[...]                        # (1, 4H)

    # --- hoisted input projection: off the serial recurrence path ----------
    # One (T*BP, F) @ (F, 4H) MXU pass for all timesteps (kept f32: one-shot,
    # preserves gate-input precision).
    xg = jnp.dot(x_ref[...], wih_ref[...],
                 preferred_element_type=jnp.float32) + bias      # (T*BP, 4H)

    # --- recurrence: state lives in vregs, static unroll over T -------------
    # Per step only h @ W_hh (bf16 operands, single native MXU pass) plus the
    # elementwise c/h update sit on the critical path.  Live vregs ~20 << 64,
    # so the static unroll cannot spill (per-step w1 loads are gone).
    # TODO(synk): if a bundle dump shows per-step RHS pushes, hold W_hh in the
    # MXU weight registers via pltpu.matmul_push_rhs / matmul_acc_lhs / pop.
    h = jnp.zeros((BP, H), jnp.float32)
    c = jnp.zeros((BP, H), jnp.float32)

    for t in range(T):
        gates = xg[t * BP:(t + 1) * BP, :] + jnp.dot(
            h.astype(jnp.bfloat16), whh,
            preferred_element_type=jnp.float32)                  # (BP, 4H) f32

        # One sigmoid + one tanh over the whole 4H-wide vreg (EUP), then slice
        # the gate quadrants.
        # TODO(synk): if these lane-offset slices lower to vselect chains on
        # the VALU, replace with pltpu.roll(s, shift=4H-kH, axis=-1)[:, :H].
        s = jax.nn.sigmoid(gates)
        g = jnp.tanh(gates)
        i_g = s[:, 0 * H:1 * H]
        f_g = s[:, 1 * H:2 * H]
        g_g = g[:, 2 * H:3 * H]
        o_g = s[:, 3 * H:4 * H]

        c = f_g * c + i_g * g_g
        h = o_g * jnp.tanh(c)

        # relu(h_t) tap -> VMEM scratch at lane offset t*H (off the h/c chain;
        # masked vst overlaps with the next step's recurrence).
        hbuf_ref[:, t * H:(t + 1) * H] = jnp.maximum(h, 0.0)

    # --- head: one K=T*H fc1 matmul, relu, fc2, softmax ---------------------
    flat = hbuf_ref[...].astype(jnp.bfloat16)                    # (BP, T*H)
    hid = jnp.maximum(
        jnp.dot(flat, w1_ref[...], preferred_element_type=jnp.float32)
        + b1_ref[...], 0.0)                                      # (BP, 256)
    logits = jnp.dot(hid, w2_ref[...],
                     preferred_element_type=jnp.float32) + b2_ref[...]
    m = jnp.max(logits, axis=1, keepdims=True)
    e = jnp.exp(logits - m)
    denom = jnp.sum(e, axis=1, keepdims=True)
    # Reciprocal on the otherwise-idle EUP slot instead of a VPU divide.
    out_ref[...] = e * pl.reciprocal(denom, approx=True)


def _forward_impl(x, params):
    """x: (B, T, F) float32 (batch_first, like PyTorch). Returns (B, L)."""
    B, T, F = x.shape
    H = params["whh_t"].shape[0]
    L = params["w2_t"].shape[1]

    # Pad batch to a sublane multiple so every per-step slice is aligned.
    # All of this layout plumbing fuses into the surrounding jit.
    BP = ((B + 7) // 8) * 8
    x_tm = jnp.transpose(x, (1, 0, 2))                   # (T, B, F) time-major
    x_tm = jnp.pad(x_tm, ((0, 0), (0, BP - B), (0, 0)))  # (T, BP, F)
    x_flat = x_tm.reshape(T * BP, F)                     # (T*BP, F)

    # bf16 casts for the MXU operands that matter (serial-chain W_hh and the
    # large-K fc1 weight); these converts fuse into this jit.
    whh_bf = params["whh_t"].astype(jnp.bfloat16)
    w1_bf = params["w1_t"].astype(jnp.bfloat16)

    vmem = pl.BlockSpec(memory_space=pltpu.MemorySpace.VMEM)
    kernel = pl.pallas_call(
        functools.partial(_lstm_classifier_kernel, seq_len=T, hidden=H),
        out_shape=jax.ShapeDtypeStruct((BP, L), jnp.float32),
        in_specs=[vmem] * 8,
        out_specs=vmem,
        scratch_shapes=[pltpu.VMEM((BP, T * H), jnp.float32)],
        # TODO(synk): for real batch sizes, add grid=(num_batch_tiles,) with
        # dimension_semantics=("parallel",) (v7x dual-TC) and constant
        # index_maps for the 7 weight operands so they stay VMEM-resident;
        # at B=2 a single block is optimal.  If T*H ever grows w1 into tens
        # of MiB, tile its K axis (earlier on v7x: 64 MiB VMEM).
    )
    out = kernel(
        x_flat,
        params["wih_t"], whh_bf, params["b_lstm"],
        w1_bf, params["b1"], params["w2_t"], params["b2"],
    )
    return out[:B]


lstm_classifier_forward = jax.jit(_forward_impl)


def _reference_forward(x, params):
    """Pure-JAX f32 reference with identical semantics (sanity check)."""
    B, T, F = x.shape
    H = params["whh_t"].shape[0]
    h = jnp.zeros((B, H), jnp.float32)
    c = jnp.zeros((B, H), jnp.float32)
    outs = []
    for t in range(T):
        gates = x[:, t, :] @ params["wih_t"] + h @ params["whh_t"] + params["b_lstm"]
        i_g = jax.nn.sigmoid(gates[:, 0 * H:1 * H])
        f_g = jax.nn.sigmoid(gates[:, 1 * H:2 * H])
        g_g = jnp.tanh(gates[:, 2 * H:3 * H])
        o_g = jax.nn.sigmoid(gates[:, 3 * H:4 * H])
        c = f_g * c + i_g * g_g
        h = o_g * jnp.tanh(c)
        outs.append(h)
    flat = jnp.maximum(jnp.concatenate(outs, axis=1), 0.0)
    hid = jnp.maximum(flat @ params["w1_t"] + params["b1"], 0.0)
    logits = hid @ params["w2_t"] + params["b2"]
    return jax.nn.softmax(logits, axis=1)


def init_params(key, num_features, seq_len, layer_size=32, num_labels=2):
    """Deterministic init mimicking PyTorch's uniform(-1/sqrt(H), 1/sqrt(H))."""
    H = layer_size
    k = 1.0 / jnp.sqrt(jnp.float32(H))
    keys = jax.random.split(key, 10)

    def u(kk, shape, bound):
        return jax.random.uniform(kk, shape, jnp.float32, -bound, bound)

    wih = u(keys[0], (4 * H, num_features), k)   # PyTorch (4H, F)
    whh = u(keys[1], (4 * H, H), k)              # PyTorch (4H, H)
    bih = u(keys[2], (4 * H,), k)
    bhh = u(keys[3], (4 * H,), k)

    k1 = 1.0 / jnp.sqrt(jnp.float32(H * seq_len))
    w1 = u(keys[4], (256, H * seq_len), k1)      # PyTorch (out, in)
    b1 = u(keys[5], (256,), k1)
    k2 = 1.0 / jnp.sqrt(jnp.float32(256))
    w2 = u(keys[6], (num_labels, 256), k2)
    b2 = u(keys[7], (num_labels,), k2)

    return {
        "wih_t": wih.T,                              # (F, 4H)
        "whh_t": whh.T,                              # (H, 4H)
        "b_lstm": (bih + bhh).reshape(1, 4 * H),     # (1, 4H)
        "w1_t": w1.T,                                # (T*H, 256)
        "b1": b1.reshape(1, 256),
        "w2_t": w2.T,                                # (256, L)
        "b2": b2.reshape(1, num_labels),
    }


if __name__ == "__main__":
    B, T, F = 2, 8, 8          # batch, seq_len, num_features
    H, L = 32, 2               # layer_size, num_labels

    key = jax.random.PRNGKey(0)
    kx, kp = jax.random.split(key)
    x = jax.random.normal(kx, (B, T, F), jnp.float32)
    params = init_params(kp, num_features=F, seq_len=T, layer_size=H, num_labels=L)

    out = lstm_classifier_forward(x, params)
    out = jax.block_until_ready(out)

    ref = _reference_forward(x, params)
    assert out.shape == (B, L)
    # Tolerances loosened vs. v2 because the W_hh / fc1 MXU operands are bf16
    # and the softmax reciprocal is the approximate EUP one (semantics-only
    # check; f32 reference).
    assert jnp.allclose(out, ref, atol=1e-2, rtol=1e-2)
    assert jnp.allclose(jnp.sum(out, axis=1), 1.0, atol=2e-2)

    print("KERNEL_OK")
</pallas_src>

<mosaic_0001>
module attributes {stable_mosaic.version = 11 : i64} {
  func.func @_lstm_classifier_kernel(%arg0: memref<64x8xf32, #tpu.memory_space<vmem>>, %arg1: memref<8x128xf32, #tpu.memory_space<vmem>>, %arg2: memref<32x128xbf16, #tpu.memory_space<vmem>>, %arg3: memref<1x128xf32, #tpu.memory_space<vmem>>, %arg4: memref<256x256xbf16, #tpu.memory_space<vmem>>, %arg5: memref<1x256xf32, #tpu.memory_space<vmem>>, %arg6: memref<256x2xf32, #tpu.memory_space<vmem>>, %arg7: memref<1x2xf32, #tpu.memory_space<vmem>>, %arg8: memref<8x2xf32, #tpu.memory_space<vmem>>, %arg9: memref<8x256xf32, #tpu.memory_space<vmem>>) attributes {dimension_semantics = [], scalar_prefetch = 0 : i64, scratch_operands = 1 : i64, tpu.core_type = #tpu.core_type<tc>} {
    %c0 = arith.constant 0 : index
    %c0_0 = arith.constant 0 : index
    %0 = vector.load %arg2[%c0, %c0_0] : memref<32x128xbf16, #tpu.memory_space<vmem>>, vector<32x128xbf16>
    %c0_1 = arith.constant 0 : index
    %c0_2 = arith.constant 0 : index
    %1 = vector.load %arg3[%c0_1, %c0_2] : memref<1x128xf32, #tpu.memory_space<vmem>>, vector<1x128xf32>
    %c0_3 = arith.constant 0 : index
    %c0_4 = arith.constant 0 : index
    %2 = vector.load %arg0[%c0_3, %c0_4] : memref<64x8xf32, #tpu.memory_space<vmem>>, vector<64x8xf32>
    %c0_5 = arith.constant 0 : index
    %c0_6 = arith.constant 0 : index
    %3 = vector.load %arg1[%c0_5, %c0_6] : memref<8x128xf32, #tpu.memory_space<vmem>>, vector<8x128xf32>
    %cst = arith.constant dense<0.000000e+00> : vector<64x128xf32>
    %4 = tpu.matmul %2, %3, %cst {dimension_numbers = #tpu.dot_dimension_numbers<[1], [0], [0], [1], [0, 0, 1, 1], [], []>} : vector<64x8xf32>, vector<8x128xf32>, vector<64x128xf32> -> vector<64x128xf32>
    %5 = vector.broadcast %1 : vector<1x128xf32> to vector<64x128xf32>
    %6 = arith.addf %4, %5 : vector<64x128xf32>
    %cst_7 = arith.constant 0.000000e+00 : f32
    %7 = vector.broadcast %cst_7 : f32 to vector<8x32xf32>
    %cst_8 = arith.constant 0.000000e+00 : f32
    %8 = vector.broadcast %cst_8 : f32 to vector<8x32xf32>
    %9 = vector.extract_strided_slice %6 {offsets = [0, 0], sizes = [8, 128], strides = [1, 1]} : vector<64x128xf32> to vector<8x128xf32>
    %10 = arith.truncf %7 : vector<8x32xf32> to vector<8x32xbf16>
    %cst_9 = arith.constant dense<0.000000e+00> : vector<8x128xf32>
    %11 = tpu.matmul %10, %0, %cst_9 {dimension_numbers = #tpu.dot_dimension_numbers<[1], [0], [0], [1], [0, 0, 1, 1], [], []>} : vector<8x32xbf16>, vector<32x128xbf16>, vector<8x128xf32> -> vector<8x128xf32>
    %12 = arith.addf %9, %11 : vector<8x128xf32>
    %13 = arith.negf %12 : vector<8x128xf32>
    %14 = math.exp %13 : vector<8x128xf32>
    %cst_10 = arith.constant 1.000000e+00 : f32
    %15 = vector.broadcast %cst_10 : f32 to vector<8x128xf32>
    %16 = arith.addf %15, %14 : vector<8x128xf32>
    %17 = arith.divf %15, %16 : vector<8x128xf32>
    %18 = math.tanh %12 : vector<8x128xf32>
    %19 = vector.extract_strided_slice %17 {offsets = [0, 0], sizes = [8, 32], strides = [1, 1]} : vector<8x128xf32> to vector<8x32xf32>
    %20 = vector.extract_strided_slice %17 {offsets = [0, 32], sizes = [8, 32], strides = [1, 1]} : vector<8x128xf32> to vector<8x32xf32>
    %21 = vector.extract_strided_slice %18 {offsets = [0, 64], sizes = [8, 32], strides = [1, 1]} : vector<8x128xf32> to vector<8x32xf32>
    %22 = vector.extract_strided_slice %17 {offsets = [0, 96], sizes = [8, 32], strides = [1, 1]} : vector<8x128xf32> to vector<8x32xf32>
    %23 = arith.mulf %20, %8 : vector<8x32xf32>
    %24 = arith.mulf %19, %21 : vector<8x32xf32>
    %25 = arith.addf %23, %24 : vector<8x32xf32>
    %26 = math.tanh %25 : vector<8x32xf32>
    %27 = arith.mulf %22, %26 : vector<8x32xf32>
    %cst_11 = arith.constant 0.000000e+00 : f32
    %28 = vector.broadcast %cst_11 : f32 to vector<8x32xf32>
    %29 = arith.maximumf %27, %28 : vector<8x32xf32>
    %c0_12 = arith.constant 0 : index
    %c0_13 = arith.constant 0 : index
    %30 = vector.load %arg9[%c0_12, %c0_13] : memref<8x256xf32, #tpu.memory_space<vmem>>, vector<8x32xf32>
    tpu.vector_store %arg9[%c0_12, %c0_13], %29 {strides = array<i32>} : memref<8x256xf32, #tpu.memory_space<vmem>>, vector<8x32xf32>,
    %31 = vector.extract_strided_slice %6 {offsets = [8, 0], sizes = [8, 128], strides = [1, 1]} : vector<64x128xf32> to vector<8x128xf32>
    %32 = arith.truncf %27 : vector<8x32xf32> to vector<8x32xbf16>
    %cst_14 = arith.constant dense<0.000000e+00> : vector<8x128xf32>
    %33 = tpu.matmul %32, %0, %cst_14 {dimension_numbers = #tpu.dot_dimension_numbers<[1], [0], [0], [1], [0, 0, 1, 1], [], []>} : vector<8x32xbf16>, vector<32x128xbf16>, vector<8x128xf32> -> vector<8x128xf32>
    %34 = arith.addf %31, %33 : vector<8x128xf32>
    %35 = arith.negf %34 : vector<8x128xf32>
    %36 = math.exp %35 : vector<8x128xf32>
    %cst_15 = arith.constant 1.000000e+00 : f32
    %37 = vector.broadcast %cst_15 : f32 to vector<8x128xf32>
    %38 = arith.addf %37, %36 : vector<8x128xf32>
    %39 = arith.divf %37, %38 : vector<8x128xf32>
    %40 = math.tanh %34 : vector<8x128xf32>
    %41 = vector.extract_strided_slice %39 {offsets = [0, 0], sizes = [8, 32], strides = [1, 1]} : vector<8x128xf32> to vector<8x32xf32>
    %42 = vector.extract_strided_slice %39 {offsets = [0, 32], sizes = [8, 32], strides = [1, 1]} : vector<8x128xf32> to vector<8x32xf32>
    %43 = vector.extract_strided_slice %40 {offsets = [0, 64], sizes = [8, 32], strides = [1, 1]} : vector<8x128xf32> to vector<8x32xf32>
    %44 = vector.extract_strided_slice %39 {offsets = [0, 96], sizes = [8, 32], strides = [1, 1]} : vector<8x128xf32> to vector<8x32xf32>
    %45 = arith.mulf %42, %25 : vector<8x32xf32>
    %46 = arith.mulf %41, %43 : vector<8x32xf32>
    %47 = arith.addf %45, %46 : vector<8x32xf32>
    %48 = math.tanh %47 : vector<8x32xf32>
    %49 = arith.mulf %44, %48 : vector<8x32xf32>
    %cst_16 = arith.constant 0.000000e+00 : f32
    %50 = vector.broadcast %cst_16 : f32 to vector<8x32xf32>
    %51 = arith.maximumf %49, %50 : vector<8x32xf32>
    %c0_17 = arith.constant 0 : index
    %c32 = arith.constant 32 : index
    %52 = vector.load %arg9[%c0_17, %c32] : memref<8x256xf32, #tpu.memory_space<vmem>>, vector<8x32xf32>
    tpu.vector_store %arg9[%c0_17, %c32], %51 {strides = array<i32>} : memref<8x256xf32, #tpu.memory_space<vmem>>, vector<8x32xf32>,
    %53 = vector.extract_strided_slice %6 {offsets = [16, 0], sizes = [8, 128], strides = [1, 1]} : vector<64x128xf32> to vector<8x128xf32>
    %54 = arith.truncf %49 : vector<8x32xf32> to vector<8x32xbf16>
    %cst_18 = arith.constant dense<0.000000e+00> : vector<8x128xf32>
    %55 = tpu.matmul %54, %0, %cst_18 {dimension_numbers = #tpu.dot_dimension_numbers<[1], [0], [0], [1], [0, 0, 1, 1], [], []>} : vector<8x32xbf16>, vector<32x128xbf16>, vector<8x128xf32> -> vector<8x128xf32>
    %56 = arith.addf %53, %55 : vector<8x128xf32>
    %57 = arith.negf %56 : vector<8x128xf32>
    %58 = math.exp %57 : vector<8x128xf32>
    %cst_19 = arith.constant 1.000000e+00 : f32
    %59 = vector.broadcast %cst_19 : f32 to vector<8x128xf32>
    %60 = arith.addf %59, %58 : vector<8x128xf32>
    %61 = arith.divf %59, %60 : vector<8x128xf32>
    %62 = math.tanh %56 : vector<8x128xf32>
    %63 = vector.extract_strided_slice %61 {offsets = [0, 0], sizes = [8, 32], strides = [1, 1]} : vector<8x128xf32> to vector<8x32xf32>
    %64 = vector.extract_strided_slice %61 {offsets = [0, 32], sizes = [8, 32], strides = [1, 1]} : vector<8x128xf32> to vector<8x32xf32>
    %65 = vector.extract_strided_slice %62 {offsets = [0, 64], sizes = [8, 32], strides = [1, 1]} : vector<8x128xf32> to vector<8x32xf32>
    %66 = vector.extract_strided_slice %61 {offsets = [0, 96], sizes = [8, 32], strides = [1, 1]} : vector<8x128xf32> to vector<8x32xf32>
    %67 = arith.mulf %64, %47 : vector<8x32xf32>
    %68 = arith.mulf %63, %65 : vector<8x32xf32>
    %69 = arith.addf %67, %68 : vector<8x32xf32>
    %70 = math.tanh %69 : vector<8x32xf32>
    %71 = arith.mulf %66, %70 : vector<8x32xf32>
    %cst_20 = arith.constant 0.000000e+00 : f32
    %72 = vector.broadcast %cst_20 : f32 to vector<8x32xf32>
    %73 = arith.maximumf %71, %72 : vector<8x32xf32>
    %c0_21 = arith.constant 0 : index
    %c64 = arith.constant 64 : index
    %74 = vector.load %arg9[%c0_21, %c64] : memref<8x256xf32, #tpu.memory_space<vmem>>, vector<8x32xf32>
    tpu.vector_store %arg9[%c0_21, %c64], %73 {strides = array<i32>} : memref<8x256xf32, #tpu.memory_space<vmem>>, vector<8x32xf32>,
    %75 = vector.extract_strided_slice %6 {offsets = [24, 0], sizes = [8, 128], strides = [1, 1]} : vector<64x128xf32> to vector<8x128xf32>
    %76 = arith.truncf %71 : vector<8x32xf32> to vector<8x32xbf16>
    %cst_22 = arith.constant dense<0.000000e+00> : vector<8x128xf32>
    %77 = tpu.matmul %76, %0, %cst_22 {dimension_numbers = #tpu.dot_dimension_numbers<[1], [0], [0], [1], [0, 0, 1, 1], [], []>} : vector<8x32xbf16>, vector<32x128xbf16>, vector<8x128xf32> -> vector<8x128xf32>
    %78 = arith.addf %75, %77 : vector<8x128xf32>
    %79 = arith.negf %78 : vector<8x128xf32>
    %80 = math.exp %79 : vector<8x128xf32>
    %cst_23 = arith.constant 1.000000e+00 : f32
    %81 = vector.broadcast %cst_23 : f32 to vector<8x128xf32>
    %82 = arith.addf %81, %80 : vector<8x128xf32>
    %83 = arith.divf %81, %82 : vector<8x128xf32>
    %84 = math.tanh %78 : vector<8x128xf32>
    %85 = vector.extract_strided_slice %83 {offsets = [0, 0], sizes = [8, 32], strides = [1, 1]} : vector<8x128xf32> to vector<8x32xf32>
    %86 = vector.extract_strided_slice %83 {offsets = [0, 32], sizes = [8, 32], strides = [1, 1]} : vector<8x128xf32> to vector<8x32xf32>
    %87 = vector.extract_strided_slice %84 {offsets = [0, 64], sizes = [8, 32], strides = [1, 1]} : vector<8x128xf32> to vector<8x32xf32>
    %88 = vector.extract_strided_slice %83 {offsets = [0, 96], sizes = [8, 32], strides = [1, 1]} : vector<8x128xf32> to vector<8x32xf32>
    %89 = arith.mulf %86, %69 : vector<8x32xf32>
    %90 = arith.mulf %85, %87 : vector<8x32xf32>
    %91 = arith.addf %89, %90 : vector<8x32xf32>
    %92 = math.tanh %91 : vector<8x32xf32>
    %93 = arith.mulf %88, %92 : vector<8x32xf32>
    %cst_24 = arith.constant 0.000000e+00 : f32
    %94 = vector.broadcast %cst_24 : f32 to vector<8x32xf32>
    %95 = arith.maximumf %93, %94 : vector<8x32xf32>
    %c0_25 = arith.constant 0 : index
    %c96 = arith.constant 96 : index
    %96 = vector.load %arg9[%c0_25, %c96] : memref<8x256xf32, #tpu.memory_space<vmem>>, vector<8x32xf32>
    tpu.vector_store %arg9[%c0_25, %c96], %95 {strides = array<i32>} : memref<8x256xf32, #tpu.memory_space<vmem>>, vector<8x32xf32>,
    %97 = vector.extract_strided_slice %6 {offsets = [32, 0], sizes = [8, 128], strides = [1, 1]} : vector<64x128xf32> to vector<8x128xf32>
    %98 = arith.truncf %93 : vector<8x32xf32> to vector<8x32xbf16>
    %cst_26 = arith.constant dense<0.000000e+00> : vector<8x128xf32>
    %99 = tpu.matmul %98, %0, %cst_26 {dimension_numbers = #tpu.dot_dimension_numbers<[1], [0], [0], [1], [0, 0, 1, 1], [], []>} : vector<8x32xbf16>, vector<32x128xbf16>, vector<8x128xf32> -> vector<8x128xf32>
    %100 = arith.addf %97, %99 : vector<8x128xf32>
    %101 = arith.negf %100 : vector<8x128xf32>
    %102 = math.exp %101 : vector<8x128xf32>
    %cst_27 = arith.constant 1.000000e+00 : f32
    %103 = vector.broadcast %cst_27 : f32 to vector<8x128xf32>
    %104 = arith.addf %103, %102 : vector<8x128xf32>
    %105 = arith.divf %103, %104 : vector<8x128xf32>
    %106 = math.tanh %100 : vector<8x128xf32>
    %107 = vector.extract_strided_slice %105 {offsets = [0, 0], sizes = [8, 32], strides = [1, 1]} : vector<8x128xf32> to vector<8x32xf32>
    %108 = vector.extract_strided_slice %105 {offsets = [0, 32], sizes = [8, 32], strides = [1, 1]} : vector<8x128xf32> to vector<8x32xf32>
    %109 = vector.extract_strided_slice %106 {offsets = [0, 64], sizes = [8, 32], strides = [1, 1]} : vector<8x128xf32> to vector<8x32xf32>
    %110 = vector.extract_strided_slice %105 {offsets = [0, 96], sizes = [8, 32], strides = [1, 1]} : vector<8x128xf32> to vector<8x32xf32>
    %111 = arith.mulf %108, %91 : vector<8x32xf32>
    %112 = arith.mulf %107, %109 : vector<8x32xf32>
    %113 = arith.addf %111, %112 : vector<8x32xf32>
    %114 = math.tanh %113 : vector<8x32xf32>
    %115 = arith.mulf %110, %114 : vector<8x32xf32>
    %cst_28 = arith.constant 0.000000e+00 : f32
    %116 = vector.broadcast %cst_28 : f32 to vector<8x32xf32>
    %117 = arith.maximumf %115, %116 : vector<8x32xf32>
    %c0_29 = arith.constant 0 : index
    %c128 = arith.constant 128 : index
    %118 = vector.load %arg9[%c0_29, %c128] : memref<8x256xf32, #tpu.memory_space<vmem>>, vector<8x32xf32>
    tpu.vector_store %arg9[%c0_29, %c128], %117 {strides = array<i32>} : memref<8x256xf32, #tpu.memory_space<vmem>>, vector<8x32xf32>,
    %119 = vector.extract_strided_slice %6 {offsets = [40, 0], sizes = [8, 128], strides = [1, 1]} : vector<64x128xf32> to vector<8x128xf32>
    %120 = arith.truncf %115 : vector<8x32xf32> to vector<8x32xbf16>
    %cst_30 = arith.constant dense<0.000000e+00> : vector<8x128xf32>
    %121 = tpu.matmul %120, %0, %cst_30 {dimension_numbers = #tpu.dot_dimension_numbers<[1], [0], [0], [1], [0, 0, 1, 1], [], []>} : vector<8x32xbf16>, vector<32x128xbf16>, vector<8x128xf32> -> vector<8x128xf32>
    %122 = arith.addf %119, %121 : vector<8x128xf32>
    %123 = arith.negf %122 : vector<8x128xf32>
    %124 = math.exp %123 : vector<8x128xf32>
    %cst_31 = arith.constant 1.000000e+00 : f32
    %125 = vector.broadcast %cst_31 : f32 to vector<8x128xf32>
    %126 = arith.addf %125, %124 : vector<8x128xf32>
    %127 = arith.divf %125, %126 : vector<8x128xf32>
    %128 = math.tanh %122 : vector<8x128xf32>
    %129 = vector.extract_strided_slice %127 {offsets = [0, 0], sizes = [8, 32], strides = [1, 1]} : vector<8x128xf32> to vector<8x32xf32>
    %130 = vector.extract_strided_slice %127 {offsets = [0, 32], sizes = [8, 32], strides = [1, 1]} : vector<8x128xf32> to vector<8x32xf32>
    %131 = vector.extract_strided_slice %128 {offsets = [0, 64], sizes = [8, 32], strides = [1, 1]} : vector<8x128xf32> to vector<8x32xf32>
    %132 = vector.extract_strided_slice %127 {offsets = [0, 96], sizes = [8, 32], strides = [1, 1]} : vector<8x128xf32> to vector<8x32xf32>
    %133 = arith.mulf %130, %113 : vector<8x32xf32>
    %134 = arith.mulf %129, %131 : vector<8x32xf32>
    %135 = arith.addf %133, %134 : vector<8x32xf32>
    %136 = math.tanh %135 : vector<8x32xf32>
    %137 = arith.mulf %132, %136 : vector<8x32xf32>
    %cst_32 = arith.constant 0.000000e+00 : f32
    %138 = vector.broadcast %cst_32 : f32 to vector<8x32xf32>
    %139 = arith.maximumf %137, %138 : vector<8x32xf32>
    %c0_33 = arith.constant 0 : index
    %c160 = arith.constant 160 : index
    %140 = vector.load %arg9[%c0_33, %c160] : memref<8x256xf32, #tpu.memory_space<vmem>>, vector<8x32xf32>
    tpu.vector_store %arg9[%c0_33, %c160], %139 {strides = array<i32>} : memref<8x256xf32, #tpu.memory_space<vmem>>, vector<8x32xf32>,
    %141 = vector.extract_strided_slice %6 {offsets = [48, 0], sizes = [8, 128], strides = [1, 1]} : vector<64x128xf32> to vector<8x128xf32>
    %142 = arith.truncf %137 : vector<8x32xf32> to vector<8x32xbf16>
    %cst_34 = arith.constant dense<0.000000e+00> : vector<8x128xf32>
    %143 = tpu.matmul %142, %0, %cst_34 {dimension_numbers = #tpu.dot_dimension_numbers<[1], [0], [0], [1], [0, 0, 1, 1], [], []>} : vector<8x32xbf16>, vector<32x128xbf16>, vector<8x128xf32> -> vector<8x128xf32>
    %144 = arith.addf %141, %143 : vector<8x128xf32>
    %145 = arith.negf %144 : vector<8x128xf32>
    %146 = math.exp %145 : vector<8x128xf32>
    %cst_35 = arith.constant 1.000000e+00 : f32
    %147 = vector.broadcast %cst_35 : f32 to vector<8x128xf32>
    %148 = arith.addf %147, %146 : vector<8x128xf32>
    %149 = arith.divf %147, %148 : vector<8x128xf32>
    %150 = math.tanh %144 : vector<8x128xf32>
    %151 = vector.extract_strided_slice %149 {offsets = [0, 0], sizes = [8, 32], strides = [1, 1]} : vector<8x128xf32> to vector<8x32xf32>
    %152 = vector.extract_strided_slice %149 {offsets = [0, 32], sizes = [8, 32], strides = [1, 1]} : vector<8x128xf32> to vector<8x32xf32>
    %153 = vector.extract_strided_slice %150 {offsets = [0, 64], sizes = [8, 32], strides = [1, 1]} : vector<8x128xf32> to vector<8x32xf32>
    %154 = vector.extract_strided_slice %149 {offsets = [0, 96], sizes = [8, 32], strides = [1, 1]} : vector<8x128xf32> to vector<8x32xf32>
    %155 = arith.mulf %152, %135 : vector<8x32xf32>
    %156 = arith.mulf %151, %153 : vector<8x32xf32>
    %157 = arith.addf %155, %156 : vector<8x32xf32>
    %158 = math.tanh %157 : vector<8x32xf32>
    %159 = arith.mulf %154, %158 : vector<8x32xf32>
    %cst_36 = arith.constant 0.000000e+00 : f32
    %160 = vector.broadcast %cst_36 : f32 to vector<8x32xf32>
    %161 = arith.maximumf %159, %160 : vector<8x32xf32>
    %c0_37 = arith.constant 0 : index
    %c192 = arith.constant 192 : index
    %162 = vector.load %arg9[%c0_37, %c192] : memref<8x256xf32, #tpu.memory_space<vmem>>, vector<8x32xf32>
    tpu.vector_store %arg9[%c0_37, %c192], %161 {strides = array<i32>} : memref<8x256xf32, #tpu.memory_space<vmem>>, vector<8x32xf32>,
    %163 = vector.extract_strided_slice %6 {offsets = [56, 0], sizes = [8, 128], strides = [1, 1]} : vector<64x128xf32> to vector<8x128xf32>
    %164 = arith.truncf %159 : vector<8x32xf32> to vector<8x32xbf16>
    %cst_38 = arith.constant dense<0.000000e+00> : vector<8x128xf32>
    %165 = tpu.matmul %164, %0, %cst_38 {dimension_numbers = #tpu.dot_dimension_numbers<[1], [0], [0], [1], [0, 0, 1, 1], [], []>} : vector<8x32xbf16>, vector<32x128xbf16>, vector<8x128xf32> -> vector<8x128xf32>
    %166 = arith.addf %163, %165 : vector<8x128xf32>
    %167 = arith.negf %166 : vector<8x128xf32>
    %168 = math.exp %167 : vector<8x128xf32>
    %cst_39 = arith.constant 1.000000e+00 : f32
    %169 = vector.broadcast %cst_39 : f32 to vector<8x128xf32>
    %170 = arith.addf %169, %168 : vector<8x128xf32>
    %171 = arith.divf %169, %170 : vector<8x128xf32>
    %172 = math.tanh %166 : vector<8x128xf32>
    %173 = vector.extract_strided_slice %171 {offsets = [0, 0], sizes = [8, 32], strides = [1, 1]} : vector<8x128xf32> to vector<8x32xf32>
    %174 = vector.extract_strided_slice %171 {offsets = [0, 32], sizes = [8, 32], strides = [1, 1]} : vector<8x128xf32> to vector<8x32xf32>
    %175 = vector.extract_strided_slice %172 {offsets = [0, 64], sizes = [8, 32], strides = [1, 1]} : vector<8x128xf32> to vector<8x32xf32>
    %176 = vector.extract_strided_slice %171 {offsets = [0, 96], sizes = [8, 32], strides = [1, 1]} : vector<8x128xf32> to vector<8x32xf32>
    %177 = arith.mulf %174, %157 : vector<8x32xf32>
    %178 = arith.mulf %173, %175 : vector<8x32xf32>
    %179 = arith.addf %177, %178 : vector<8x32xf32>
    %180 = math.tanh %179 : vector<8x32xf32>
    %181 = arith.mulf %176, %180 : vector<8x32xf32>
    %cst_40 = arith.constant 0.000000e+00 : f32
    %182 = vector.broadcast %cst_40 : f32 to vector<8x32xf32>
    %183 = arith.maximumf %181, %182 : vector<8x32xf32>
    %c0_41 = arith.constant 0 : index
    %c224 = arith.constant 224 : index
    %184 = vector.load %arg9[%c0_41, %c224] : memref<8x256xf32, #tpu.memory_space<vmem>>, vector<8x32xf32>
    tpu.vector_store %arg9[%c0_41, %c224], %183 {strides = array<i32>} : memref<8x256xf32, #tpu.memory_space<vmem>>, vector<8x32xf32>,
    %c0_42 = arith.constant 0 : index
    %c0_43 = arith.constant 0 : index
    %185 = vector.load %arg9[%c0_42, %c0_43] : memref<8x256xf32, #tpu.memory_space<vmem>>, vector<8x256xf32>
    %186 = arith.truncf %185 : vector<8x256xf32> to vector<8x256xbf16>
    %c0_44 = arith.constant 0 : index
    %c0_45 = arith.constant 0 : index
    %187 = vector.load %arg4[%c0_44, %c0_45] : memref<256x256xbf16, #tpu.memory_space<vmem>>, vector<256x256xbf16>
    %cst_46 = arith.constant dense<0.000000e+00> : vector<8x256xf32>
    %188 = tpu.matmul %186, %187, %cst_46 {dimension_numbers = #tpu.dot_dimension_numbers<[1], [0], [0], [1], [0, 0, 1, 1], [], []>} : vector<8x256xbf16>, vector<256x256xbf16>, vector<8x256xf32> -> vector<8x256xf32>
    %c0_47 = arith.constant 0 : index
    %c0_48 = arith.constant 0 : index
    %189 = vector.load %arg5[%c0_47, %c0_48] : memref<1x256xf32, #tpu.memory_space<vmem>>, vector<1x256xf32>
    %190 = vector.broadcast %189 : vector<1x256xf32> to vector<8x256xf32>
    %191 = arith.addf %188, %190 : vector<8x256xf32>
    %cst_49 = arith.constant 0.000000e+00 : f32
    %192 = vector.broadcast %cst_49 : f32 to vector<8x256xf32>
    %193 = arith.maximumf %191, %192 : vector<8x256xf32>
    %c0_50 = arith.constant 0 : index
    %c0_51 = arith.constant 0 : index
    %194 = vector.load %arg6[%c0_50, %c0_51] : memref<256x2xf32, #tpu.memory_space<vmem>>, vector<256x2xf32>
    %cst_52 = arith.constant dense<0.000000e+00> : vector<8x2xf32>
    %195 = tpu.matmul %193, %194, %cst_52 {dimension_numbers = #tpu.dot_dimension_numbers<[1], [0], [0], [1], [0, 0, 1, 1], [], []>} : vector<8x256xf32>, vector<256x2xf32>, vector<8x2xf32> -> vector<8x2xf32>
    %c0_53 = arith.constant 0 : index
    %c0_54 = arith.constant 0 : index
    %196 = vector.load %arg7[%c0_53, %c0_54] : memref<1x2xf32, #tpu.memory_space<vmem>>, vector<1x2xf32>
    %197 = vector.broadcast %196 : vector<1x2xf32> to vector<8x2xf32>
    %198 = arith.addf %195, %197 : vector<8x2xf32>
    %cst_55 = arith.constant dense<0xFF800000> : vector<8xf32>
    %199 = vector.multi_reduction <maximumf>, %198, %cst_55 [1] : vector<8x2xf32> to vector<8xf32>
    %200 = vector.shape_cast %199 : vector<8xf32> to vector<8x1xf32>
    %201 = vector.broadcast %200 : vector<8x1xf32> to vector<8x2xf32>
    %202 = arith.subf %198, %201 : vector<8x2xf32>
    %203 = math.exp %202 : vector<8x2xf32>
    %cst_56 = arith.constant dense<0.000000e+00> : vector<8xf32>
    %204 = vector.multi_reduction <add>, %203, %cst_56 [1] : vector<8x2xf32> to vector<8xf32>
    %205 = vector.shape_cast %204 : vector<8xf32> to vector<8x1xf32>
    %206 = tpu.reciprocal %205 {approx = true} : vector<8x1xf32> -> vector<8x1xf32>
    %207 = vector.broadcast %206 : vector<8x1xf32> to vector<8x2xf32>
    %208 = arith.mulf %203, %207 : vector<8x2xf32>
    %c0_57 = arith.constant 0 : index
    %c0_58 = arith.constant 0 : index
    %209 = vector.load %arg8[%c0_57, %c0_58] : memref<8x2xf32, #tpu.memory_space<vmem>>, vector<8x2xf32>
    tpu.vector_store %arg8[%c0_57, %c0_58], %208 {strides = array<i32>} : memref<8x2xf32, #tpu.memory_space<vmem>>, vector<8x2xf32>,
    return
  }
}

</mosaic_0001>

<llo_original>
// kernel: _forward_impl.1
$region0: #{_forward_impl.1}
  #allocation0 [shape = 'u32[]', space=smem, size = 0x4, offset = 0x4, fixed_abs, tag = 'smem constant byte address 0x4 - core index']
  #allocation1 [shape = 'u32[72,128]{1,0:T(1,128)}', space=vmem, size = 0x9000, scoped, tag = 'internal scratch']
  #allocation2 [shape = 'f32[8,256]{1,0:T(8,128)}', space=vmem, size = 0x2000, scoped, tag = 'scratch operand']
  %s0 = inlined_call_operand.vmem [shape: f32[64,8], index: 0, kind: input, shape index: {}]
  %s1 = inlined_call_operand.vmem [shape: f32[8,128], index: 1, kind: input, shape index: {}]
  %s2 = inlined_call_operand.vmem [shape: bf16[32,128], index: 2, kind: input, shape index: {}]
  %s3 = inlined_call_operand.vmem [shape: f32[1,128], index: 3, kind: input, shape index: {}]
  %s4 = inlined_call_operand.vmem [shape: bf16[256,256], index: 4, kind: input, shape index: {}]
  %s5 = inlined_call_operand.vmem [shape: f32[1,256], index: 5, kind: input, shape index: {}]
  %s6 = inlined_call_operand.vmem [shape: f32[256,2], index: 6, kind: input, shape index: {}]
  %s7 = inlined_call_operand.vmem [shape: f32[1,2], index: 7, kind: input, shape index: {}]
  %s8 = inlined_call_operand.vmem [shape: f32[8,2], index: 8, kind: output, shape index: {}]
  %s9 = sld [smem:[#allocation0]]
  $region42: #{_forward_impl.1} parent=0
    _
  %s11 = ssub.s32 1, %s9
  %s12 = scalar_select 0, %s11, %s9
  // Predicated region
  $region2: #{_forward_impl.1} parent=0 // pred_check
    _
  $region3: #{_forward_impl.1} parent=0 // pred_check_branch
    %14 = sbr.rel (0) target = $region5
  $region4: #{_forward_impl.1} parent=0 // pred_region
    _
  $region5: #{_forward_impl.1} parent=0 // pred_fallthru
    _
  // Predicated region
  $region6: #{_forward_impl.1} parent=0 // pred_check
    _
  $region7: #{_forward_impl.1} parent=0 // pred_check_branch
    %16 = sbr.rel (0) target = $region9
  $region8: #{_forward_impl.1} parent=0 // pred_region
    _
  $region9: #{_forward_impl.1} parent=0 // pred_fallthru
    _
  // Predicated region
  $region10: #{_forward_impl.1} parent=0 // pred_check
    _
  $region11: #{_forward_impl.1} parent=0 // pred_check_branch
    %18 = sbr.rel (0) target = $region13
  $region12: #{_forward_impl.1} parent=0 // pred_region
    _
  $region13: #{_forward_impl.1} parent=0 // pred_fallthru
    _
  // Predicated region
  $region14: #{_forward_impl.1} parent=0 // pred_check
    _
  $region15: #{_forward_impl.1} parent=0 // pred_check_branch
    %20 = sbr.rel (0) target = $region17
  $region16: #{_forward_impl.1} parent=0 // pred_region
    _
  $region17: #{_forward_impl.1} parent=0 // pred_fallthru
    _
  // Predicated region
  $region18: #{_forward_impl.1} parent=0 // pred_check
    _
  $region19: #{_forward_impl.1} parent=0 // pred_check_branch
    %22 = sbr.rel (0) target = $region21
  $region20: #{_forward_impl.1} parent=0 // pred_region
    _
  $region21: #{_forward_impl.1} parent=0 // pred_fallthru
    _
  // Predicated region
  $region22: #{_forward_impl.1} parent=0 // pred_check
    _
  $region23: #{_forward_impl.1} parent=0 // pred_check_branch
    %24 = sbr.rel (0) target = $region25
  $region24: #{_forward_impl.1} parent=0 // pred_region
    _
  $region25: #{_forward_impl.1} parent=0 // pred_fallthru
    _
  // Predicated region
  $region26: #{_forward_impl.1} parent=0 // pred_check
    _
  $region27: #{_forward_impl.1} parent=0 // pred_check_branch
    %26 = sbr.rel (0) target = $region29
  $region28: #{_forward_impl.1} parent=0 // pred_region
    _
  $region29: #{_forward_impl.1} parent=0 // pred_fallthru
    _
  // Predicated region
  $region30: #{_forward_impl.1} parent=0 // pred_check
    _
  $region31: #{_forward_impl.1} parent=0 // pred_check_branch
    %28 = sbr.rel (0) target = $region33
  $region32: #{_forward_impl.1} parent=0 // pred_region
    _
  $region33: #{_forward_impl.1} parent=0 // pred_fallthru
    _
  %v30 = vld [vmem:[%s2] sm:$0xf]
  %v31 = vld [vmem:[%s2 + $0x4] sm:$0xf]
  %v32 = vld [vmem:[%s2 + $0x8] sm:$0xf]
  %v33 = vld [vmem:[%s2 + $0xc] sm:$0xf]
  %v34 = vld [vmem:[%s3] sm:$0x1]
  %v35 = vld [vmem:[%s0] sm:$0xff]
  %v36 = vld [vmem:[%s0 + $0x8] sm:$0xff]
  %v37 = vld [vmem:[%s0 + $0x10] sm:$0xff]
  %v38 = vld [vmem:[%s0 + $0x18] sm:$0xff]
  %v39 = vld [vmem:[%s0 + $0x20] sm:$0xff]
  %v40 = vld [vmem:[%s0 + $0x28] sm:$0xff]
  %v41 = vld [vmem:[%s0 + $0x30] sm:$0xff]
  %v42 = vld [vmem:[%s0 + $0x38] sm:$0xff]
  %v43 = vld [vmem:[%s1] sm:$0xff]
  %v45 = vperm.slane %v34, 0
  %vm47 = vcmask 64512
  %v49 = vsel %vm47, %v35, 0
  %v52 = vsel %vm47, %v36, 0
  %v55 = vsel %vm47, %v37, 0
  %v58 = vsel %vm47, %v38, 0
  %v61 = vsel %vm47, %v39, 0
  %v64 = vsel %vm47, %v40, 0
  %v67 = vsel %vm47, %v41, 0
  %v70 = vsel %vm47, %v42, 0
  %72 = vmatpush.msra.mxu0 0.0
  %73 = vmatpush.msra.mxu0 0.0
  %74 = vmatpush.msra.mxu0 0.0
  %75 = vmatpush.msra.mxu0 0.0
  %76 = vmatpush.msra.mxu0 0.0
  %77 = vmatpush.msra.mxu0 0.0
  %78 = vmatpush.msra.mxu0 0.0
  %79 = vmatpush.msra.mxu0 0.0
  %80 = vmatpush.msra.mxu0 0.0
  %81 = vmatpush.msra.mxu0 0.0
  %82 = vmatpush.msra.mxu0 0.0
  %83 = vmatpush.msra.mxu0 0.0
  %84 = vmatpush.msra.mxu0 0.0
  %85 = vmatpush.msra.mxu0 0.0
  %86 = vmatpush.msra.mxu0 0.0
  %87 = vmatpush.msra.mxu0 %v43
  %88 = vmatmul.f32.gmra.mxu0 %v49
  %v89 = vpop.f32.mrf.mxu0
  %v90 = vadd.f32 %v45, %v89
  %91 = vmatmul.f32.gmra.mxu0 %v52
  %v92 = vpop.f32.mrf.mxu0
  %v93 = vadd.f32 %v45, %v92
  %94 = vmatmul.f32.gmra.mxu0 %v55
  %v95 = vpop.f32.mrf.mxu0
  %v96 = vadd.f32 %v45, %v95
  %97 = vmatmul.f32.gmra.mxu0 %v58
  %v98 = vpop.f32.mrf.mxu0
  %v99 = vadd.f32 %v45, %v98
  %100 = vmatmul.f32.gmra.mxu0 %v61
  %v101 = vpop.f32.mrf.mxu0
  %v102 = vadd.f32 %v45, %v101
  %103 = vmatmul.f32.gmra.mxu0 %v64
  %v104 = vpop.f32.mrf.mxu0
  %v105 = vadd.f32 %v45, %v104
  %106 = vmatmul.f32.gmra.mxu0 %v67
  %v107 = vpop.f32.mrf.mxu0
  %v108 = vadd.f32 %v45, %v107
  %109 = vmatmul.f32.gmra.mxu0 %v70
  %v110 = vpop.f32.mrf.mxu0
  %v111 = vadd.f32 %v45, %v110
  %112 = vdwg.mxu0
  %v117 = vunpack.c.l.b16 %v30
  %v118 = vunpack.c.l.b16 %v31
  %v119 = vunpack.c.l.b16 %v32
  %v120 = vunpack.c.l.b16 %v33
  %v121 = vpack.c.b16 %v118, %v117
  %v122 = vpack.c.b16 %v120, %v119
  %vm125 = vcmask 261120
  %v127 = vsel %vm125, 0, 0
  %129 = vmatpush.bf16.msra.mxu0 0
  %130 = vmatpush.bf16.msra.mxu0 0
  %131 = vmatpush.bf16.msra.mxu0 0
  %132 = vmatpush.bf16.msra.mxu0 0
  %133 = vmatpush.bf16.msra.mxu0 0
  %134 = vmatpush.bf16.msra.mxu0 0
  %135 = vmatpush.bf16.msra.mxu0 %v122
  %136 = vmatpush.bf16.msra.mxu0 %v121
  %137 = vmatmul.bf16.gmra.mxu0 %v127
  %v138 = vpop.f32.mrf.mxu0
  %v139 = vadd.f32 0.0, %v138
  %v140 = vpop.f32.mrf.mxu0
  %141 = vdwg.mxu0
  %v142 = vadd.f32 %v90, %v139
  %v143 = vxor.u32 %v142, 2147483648
  %v144 = vmul.f32 %v143, 1.442695
  %v145 = vpow.pop %v144
  %v146 = vadd.f32 %v145, 1.0
  %v147 = vrcp.pop %v146
  %v148 = vmul.f32 %v146, %v147
  %v149 = vsub.f32 1.0, %v148
  %v150 = vmul.f32 %v147, %v149
  %v151 = vadd.f32 %v147, %v150
  %vm152 = vweird.f32 %v146
  %vm153 = vweird.f32 %v147
  %vm154 = vmor %vm152, %vm153
  %v155 = vsel %vm154, %v147, %v151
  %v156 = vand.u32 2147483647, %v146
  %vm157 = vcmp.eq.f32.partialorder %v156, 8.507059e+37
  %v158 = vand.u32 %v146, 2147483648
  %v159 = vor.u32 1.1754944e-38, %v158
  %v160 = vsel %vm157, %v159, %v155
  %v161 = vmul.f32 1.0, %v160
  %v162 = vtanh.pop %v142
  %v163 = vmul.f32 %v161, 0.0
  %165 = vrot.lane.b32.xlu0 %v162, 64
  %v166 = vpop.permute.xlu0 %165
  %v168 = vmul.f32 %v161, %v166
  %170 = vrot.lane.b32.xlu0 %v168, 32
  %v171 = vpop.permute.xlu0 %170
  %v173 = vadd.f32 %v163, %v171
  %v174 = vtanh.pop %v173
  %176 = vrot.lane.b32.xlu0 %v174, 64
  %v177 = vpop.permute.xlu0 %176
  %v179 = vmul.f32 %v161, %v177
  %v180 = vmax.f32 %v179, 0.0
  %182 = vrot.lane.b32.xlu0 %v180, 32
  %v183 = vpop.permute.xlu0 %182
  %185 = vst.msk [vmem:[#allocation2] sm:$0xff] %vm125, %v183
  %v186 = vpack.c.bf16 %v179, %v179
  %188 = vrot.lane.b32.xlu0 %v186, 32
  %v189 = vpop.permute.xlu0 %188
  %v191 = vsel %vm125, %v189, 0
  %193 = vmatpush.bf16.msra.mxu0 0
  %194 = vmatpush.bf16.msra.mxu0 0
  %195 = vmatpush.bf16.msra.mxu0 0
  %196 = vmatpush.bf16.msra.mxu0 0
  %197 = vmatpush.bf16.msra.mxu0 0
  %198 = vmatpush.bf16.msra.mxu0 0
  %199 = vmatpush.bf16.msra.mxu0 %v122
  %200 = vmatpush.bf16.msra.mxu0 %v121
  %201 = vmatmul.bf16.gmra.mxu0 %v191
  %v202 = vpop.f32.mrf.mxu0
  %v203 = vadd.f32 0.0, %v202
  %v204 = vpop.f32.mrf.mxu0
  %205 = vdwg.mxu0
  %v206 = vadd.f32 %v93, %v203
  %v207 = vxor.u32 %v206, 2147483648
  %v208 = vmul.f32 %v207, 1.442695
  %v209 = vpow.pop %v208
  %v210 = vadd.f32 %v209, 1.0
  %v211 = vrcp.pop %v210
  %v212 = vmul.f32 %v210, %v211
  %v213 = vsub.f32 1.0, %v212
  %v214 = vmul.f32 %v211, %v213
  %v215 = vadd.f32 %v211, %v214
  %vm216 = vweird.f32 %v210
  %vm217 = vweird.f32 %v211
  %vm218 = vmor %vm216, %vm217
  %v219 = vsel %vm218, %v211, %v215
  %v220 = vand.u32 2147483647, %v210
  %vm221 = vcmp.eq.f32.partialorder %v220, 8.507059e+37
  %v222 = vand.u32 %v210, 2147483648
  %v223 = vor.u32 1.1754944e-38, %v222
  %v224 = vsel %vm221, %v223, %v219
  %v225 = vmul.f32 1.0, %v224
  %v226 = vtanh.pop %v206
  %v227 = vmul.f32 %v225, %v173
  %229 = vrot.lane.b32.xlu0 %v226, 64
  %v230 = vpop.permute.xlu0 %229
  %v232 = vmul.f32 %v225, %v230
  %234 = vrot.lane.b32.xlu0 %v232, 32
  %v235 = vpop.permute.xlu0 %234
  %v237 = vadd.f32 %v227, %v235
  %v238 = vtanh.pop %v237
  %240 = vrot.lane.b32.xlu0 %v238, 64
  %v241 = vpop.permute.xlu0 %240
  %v243 = vmul.f32 %v225, %v241
  %v244 = vmax.f32 %v243, 0.0
  %246 = vrot.lane.b32.xlu0 %v244, 64
  %v247 = vpop.permute.xlu0 %246
  %vm249 = vcmask 523520
  %250 = vst.msk [vmem:[#allocation2] sm:$0xff] %vm249, %v247
  %v251 = vpack.c.bf16 %v243, %v243
  %253 = vrot.lane.b32.xlu0 %v251, 32
  %v254 = vpop.permute.xlu0 %253
  %v256 = vsel %vm125, %v254, 0
  %258 = vmatpush.bf16.msra.mxu0 0
  %259 = vmatpush.bf16.msra.mxu0 0
  %260 = vmatpush.bf16.msra.mxu0 0
  %261 = vmatpush.bf16.msra.mxu0 0
  %262 = vmatpush.bf16.msra.mxu0 0
  %263 = vmatpush.bf16.msra.mxu0 0
  %264 = vmatpush.bf16.msra.mxu0 %v122
  %265 = vmatpush.bf16.msra.mxu0 %v121
  %266 = vmatmul.bf16.gmra.mxu0 %v256
  %v267 = vpop.f32.mrf.mxu0
  %v268 = vadd.f32 0.0, %v267
  %v269 = vpop.f32.mrf.mxu0
  %270 = vdwg.mxu0
  %v271 = vadd.f32 %v96, %v268
  %v272 = vxor.u32 %v271, 2147483648
  %v273 = vmul.f32 %v272, 1.442695
  %v274 = vpow.pop %v273
  %v275 = vadd.f32 %v274, 1.0
  %v276 = vrcp.pop %v275
  %v277 = vmul.f32 %v275, %v276
  %v278 = vsub.f32 1.0, %v277
  %v279 = vmul.f32 %v276, %v278
  %v280 = vadd.f32 %v276, %v279
  %vm281 = vweird.f32 %v275
  %vm282 = vweird.f32 %v276
  %vm283 = vmor %vm281, %vm282
  %v284 = vsel %vm283, %v276, %v280
  %v285 = vand.u32 2147483647, %v275
  %vm286 = vcmp.eq.f32.partialorder %v285, 8.507059e+37
  %v287 = vand.u32 %v275, 2147483648
  %v288 = vor.u32 1.1754944e-38, %v287
  %v289 = vsel %vm286, %v288, %v284
  %v290 = vmul.f32 1.0, %v289
  %v291 = vtanh.pop %v271
  %v292 = vmul.f32 %v290, %v237
  %294 = vrot.lane.b32.xlu0 %v291, 64
  %v295 = vpop.permute.xlu0 %294
  %v297 = vmul.f32 %v290, %v295
  %299 = vrot.lane.b32.xlu0 %v297, 32
  %v300 = vpop.permute.xlu0 %299
  %v302 = vadd.f32 %v292, %v300
  %v303 = vtanh.pop %v302
  %305 = vrot.lane.b32.xlu0 %v303, 64
  %v306 = vpop.permute.xlu0 %305
  %v308 = vmul.f32 %v290, %v306
  %v309 = vmax.f32 %v308, 0.0
  %311 = vrot.lane.b32.xlu0 %v309, 96
  %v312 = vpop.permute.xlu0 %311
  %vm314 = vcmask 785920
  %315 = vst.msk [vmem:[#allocation2] sm:$0xff] %vm314, %v312
  %v316 = vpack.c.bf16 %v308, %v308
  %318 = vrot.lane.b32.xlu0 %v316, 32
  %v319 = vpop.permute.xlu0 %318
  %v321 = vsel %vm125, %v319, 0
  %323 = vmatpush.bf16.msra.mxu0 0
  %324 = vmatpush.bf16.msra.mxu0 0
  %325 = vmatpush.bf16.msra.mxu0 0
  %326 = vmatpush.bf16.msra.mxu0 0
  %327 = vmatpush.bf16.msra.mxu0 0
  %328 = vmatpush.bf16.msra.mxu0 0
  %329 = vmatpush.bf16.msra.mxu0 %v122
  %330 = vmatpush.bf16.msra.mxu0 %v121
  %331 = vmatmul.bf16.gmra.mxu0 %v321
  %v332 = vpop.f32.mrf.mxu0
  %v333 = vadd.f32 0.0, %v332
  %v334 = vpop.f32.mrf.mxu0
  %335 = vdwg.mxu0
  %v336 = vadd.f32 %v99, %v333
  %v337 = vxor.u32 %v336, 2147483648
  %v338 = vmul.f32 %v337, 1.442695
  %v339 = vpow.pop %v338
  %v340 = vadd.f32 %v339, 1.0
  %v341 = vrcp.pop %v340
  %v342 = vmul.f32 %v340, %v341
  %v343 = vsub.f32 1.0, %v342
  %v344 = vmul.f32 %v341, %v343
  %v345 = vadd.f32 %v341, %v344
  %vm346 = vweird.f32 %v340
  %vm347 = vweird.f32 %v341
  %vm348 = vmor %vm346, %vm347
  %v349 = vsel %vm348, %v341, %v345
  %v350 = vand.u32 2147483647, %v340
  %vm351 = vcmp.eq.f32.partialorder %v350, 8.507059e+37
  %v352 = vand.u32 %v340, 2147483648
  %v353 = vor.u32 1.1754944e-38, %v352
  %v354 = vsel %vm351, %v353, %v349
  %v355 = vmul.f32 1.0, %v354
  %v356 = vtanh.pop %v336
  %v357 = vmul.f32 %v355, %v302
  %359 = vrot.lane.b32.xlu0 %v356, 64
  %v360 = vpop.permute.xlu0 %359
  %v362 = vmul.f32 %v355, %v360
  %364 = vrot.lane.b32.xlu0 %v362, 32
  %v365 = vpop.permute.xlu0 %364
  %v367 = vadd.f32 %v357, %v365
  %v368 = vtanh.pop %v367
  %370 = vrot.lane.b32.xlu0 %v368, 64
  %v371 = vpop.permute.xlu0 %370
  %v373 = vmul.f32 %v355, %v371
  %v374 = vmax.f32 %v373, 0.0
  %vm375 = vcmask 1048320
  %376 = vst.msk [vmem:[#allocation2] sm:$0xff] %vm375, %v374
  %v377 = vpack.c.bf16 %v373, %v373
  %379 = vrot.lane.b32.xlu0 %v377, 32
  %v380 = vpop.permute.xlu0 %379
  %v382 = vsel %vm125, %v380, 0
  %384 = vmatpush.bf16.msra.mxu0 0
  %385 = vmatpush.bf16.msra.mxu0 0
  %386 = vmatpush.bf16.msra.mxu0 0
  %387 = vmatpush.bf16.msra.mxu0 0
  %388 = vmatpush.bf16.msra.mxu0 0
  %389 = vmatpush.bf16.msra.mxu0 0
  %390 = vmatpush.bf16.msra.mxu0 %v122
  %391 = vmatpush.bf16.msra.mxu0 %v121
  %392 = vmatmul.bf16.gmra.mxu0 %v382
  %v393 = vpop.f32.mrf.mxu0
  %v394 = vadd.f32 0.0, %v393
  %v395 = vpop.f32.mrf.mxu0
  %396 = vdwg.mxu0
  %v397 = vadd.f32 %v102, %v394
  %v398 = vxor.u32 %v397, 2147483648
  %v399 = vmul.f32 %v398, 1.442695
  %v400 = vpow.pop %v399
  %v401 = vadd.f32 %v400, 1.0
  %v402 = vrcp.pop %v401
  %v403 = vmul.f32 %v401, %v402
  %v404 = vsub.f32 1.0, %v403
  %v405 = vmul.f32 %v402, %v404
  %v406 = vadd.f32 %v402, %v405
  %vm407 = vweird.f32 %v401
  %vm408 = vweird.f32 %v402
  %vm409 = vmor %vm407, %vm408
  %v410 = vsel %vm409, %v402, %v406
  %v411 = vand.u32 2147483647, %v401
  %vm412 = vcmp.eq.f32.partialorder %v411, 8.507059e+37
  %v413 = vand.u32 %v401, 2147483648
  %v414 = vor.u32 1.1754944e-38, %v413
  %v415 = vsel %vm412, %v414, %v410
  %v416 = vmul.f32 1.0, %v415
  %v417 = vtanh.pop %v397
  %v418 = vmul.f32 %v416, %v367
  %420 = vrot.lane.b32.xlu0 %v417, 64
  %v421 = vpop.permute.xlu0 %420
  %v423 = vmul.f32 %v416, %v421
  %425 = vrot.lane.b32.xlu0 %v423, 32
  %v426 = vpop.permute.xlu0 %425
  %v428 = vadd.f32 %v418, %v426
  %v429 = vtanh.pop %v428
  %431 = vrot.lane.b32.xlu0 %v429, 64
  %v432 = vpop.permute.xlu0 %431
  %v434 = vmul.f32 %v416, %v432
  %v435 = vmax.f32 %v434, 0.0
  %437 = vrot.lane.b32.xlu0 %v435, 32
  %v438 = vpop.permute.xlu0 %437
  %440 = vst.msk [vmem:[#allocation2 + $0x8] sm:$0xff] %vm125, %v438
  %v441 = vpack.c.bf16 %v434, %v434
  %443 = vrot.lane.b32.xlu0 %v441, 32
  %v444 = vpop.permute.xlu0 %443
  %v446 = vsel %vm125, %v444, 0
  %448 = vmatpush.bf16.msra.mxu0 0
  %449 = vmatpush.bf16.msra.mxu0 0
  %450 = vmatpush.bf16.msra.mxu0 0
  %451 = vmatpush.bf16.msra.mxu0 0
  %452 = vmatpush.bf16.msra.mxu0 0
  %453 = vmatpush.bf16.msra.mxu0 0
  %454 = vmatpush.bf16.msra.mxu0 %v122
  %455 = vmatpush.bf16.msra.mxu0 %v121
  %456 = vmatmul.bf16.gmra.mxu0 %v446
  %v457 = vpop.f32.mrf.mxu0
  %v458 = vadd.f32 0.0, %v457
  %v459 = vpop.f32.mrf.mxu0
  %460 = vdwg.mxu0
  %v461 = vadd.f32 %v105, %v458
  %v462 = vxor.u32 %v461, 2147483648
  %v463 = vmul.f32 %v462, 1.442695
  %v464 = vpow.pop %v463
  %v465 = vadd.f32 %v464, 1.0
  %v466 = vrcp.pop %v465
  %v467 = vmul.f32 %v465, %v466
  %v468 = vsub.f32 1.0, %v467
  %v469 = vmul.f32 %v466, %v468
  %v470 = vadd.f32 %v466, %v469
  %vm471 = vweird.f32 %v465
  %vm472 = vweird.f32 %v466
  %vm473 = vmor %vm471, %vm472
  %v474 = vsel %vm473, %v466, %v470
  %v475 = vand.u32 2147483647, %v465
  %vm476 = vcmp.eq.f32.partialorder %v475, 8.507059e+37
  %v477 = vand.u32 %v465, 2147483648
  %v478 = vor.u32 1.1754944e-38, %v477
  %v479 = vsel %vm476, %v478, %v474
  %v480 = vmul.f32 1.0, %v479
  %v481 = vtanh.pop %v461
  %v482 = vmul.f32 %v480, %v428
  %484 = vrot.lane.b32.xlu0 %v481, 64
  %v485 = vpop.permute.xlu0 %484
  %v487 = vmul.f32 %v480, %v485
  %489 = vrot.lane.b32.xlu0 %v487, 32
  %v490 = vpop.permute.xlu0 %489
  %v492 = vadd.f32 %v482, %v490
  %v493 = vtanh.pop %v492
  %495 = vrot.lane.b32.xlu0 %v493, 64
  %v496 = vpop.permute.xlu0 %495
  %v498 = vmul.f32 %v480, %v496
  %v499 = vmax.f32 %v498, 0.0
  %501 = vrot.lane.b32.xlu0 %v499, 64
  %v502 = vpop.permute.xlu0 %501
  %504 = vst.msk [vmem:[#allocation2 + $0x8] sm:$0xff] %vm249, %v502
  %v505 = vpack.c.bf16 %v498, %v498
  %507 = vrot.lane.b32.xlu0 %v505, 32
  %v508 = vpop.permute.xlu0 %507
  %v510 = vsel %vm125, %v508, 0
  %512 = vmatpush.bf16.msra.mxu0 0
  %513 = vmatpush.bf16.msra.mxu0 0
  %514 = vmatpush.bf16.msra.mxu0 0
  %515 = vmatpush.bf16.msra.mxu0 0
  %516 = vmatpush.bf16.msra.mxu0 0
  %517 = vmatpush.bf16.msra.mxu0 0
  %518 = vmatpush.bf16.msra.mxu0 %v122
  %519 = vmatpush.bf16.msra.mxu0 %v121
  %520 = vmatmul.bf16.gmra.mxu0 %v510
  %v521 = vpop.f32.mrf.mxu0
  %v522 = vadd.f32 0.0, %v521
  %v523 = vpop.f32.mrf.mxu0
  %524 = vdwg.mxu0
  %v525 = vadd.f32 %v108, %v522
  %v526 = vxor.u32 %v525, 2147483648
  %v527 = vmul.f32 %v526, 1.442695
  %v528 = vpow.pop %v527
  %v529 = vadd.f32 %v528, 1.0
  %v530 = vrcp.pop %v529
  %v531 = vmul.f32 %v529, %v530
  %v532 = vsub.f32 1.0, %v531
  %v533 = vmul.f32 %v530, %v532
  %v534 = vadd.f32 %v530, %v533
  %vm535 = vweird.f32 %v529
  %vm536 = vweird.f32 %v530
  %vm537 = vmor %vm535, %vm536
  %v538 = vsel %vm537, %v530, %v534
  %v539 = vand.u32 2147483647, %v529
  %vm540 = vcmp.eq.f32.partialorder %v539, 8.507059e+37
  %v541 = vand.u32 %v529, 2147483648
  %v542 = vor.u32 1.1754944e-38, %v541
  %v543 = vsel %vm540, %v542, %v538
  %v544 = vmul.f32 1.0, %v543
  %v545 = vtanh.pop %v525
  %v546 = vmul.f32 %v544, %v492
  %548 = vrot.lane.b32.xlu0 %v545, 64
  %v549 = vpop.permute.xlu0 %548
  %v551 = vmul.f32 %v544, %v549
  %553 = vrot.lane.b32.xlu0 %v551, 32
  %v554 = vpop.permute.xlu0 %553
  %v556 = vadd.f32 %v546, %v554
  %v557 = vtanh.pop %v556
  %559 = vrot.lane.b32.xlu0 %v557, 64
  %v560 = vpop.permute.xlu0 %559
  %v562 = vmul.f32 %v544, %v560
  %v563 = vmax.f32 %v562, 0.0
  %565 = vrot.lane.b32.xlu0 %v563, 96
  %v566 = vpop.permute.xlu0 %565
  %568 = vst.msk [vmem:[#allocation2 + $0x8] sm:$0xff] %vm314, %v566
  %v569 = vpack.c.bf16 %v562, %v562
  %571 = vrot.lane.b32.xlu0 %v569, 32
  %v572 = vpop.permute.xlu0 %571
  %v574 = vsel %vm125, %v572, 0
  %576 = vmatpush.bf16.msra.mxu0 0
  %577 = vmatpush.bf16.msra.mxu0 0
  %578 = vmatpush.bf16.msra.mxu0 0
  %579 = vmatpush.bf16.msra.mxu0 0
  %580 = vmatpush.bf16.msra.mxu0 0
  %581 = vmatpush.bf16.msra.mxu0 0
  %582 = vmatpush.bf16.msra.mxu0 %v122
  %583 = vmatpush.bf16.msra.mxu0 %v121
  %584 = vmatmul.bf16.gmra.mxu0 %v574
  %v585 = vpop.f32.mrf.mxu0
  %v586 = vadd.f32 0.0, %v585
  %v587 = vpop.f32.mrf.mxu0
  %588 = vdwg.mxu0
  %v589 = vadd.f32 %v111, %v586
  %v590 = vxor.u32 %v589, 2147483648
  %v591 = vmul.f32 %v590, 1.442695
  %v592 = vpow.pop %v591
  %v593 = vadd.f32 %v592, 1.0
  %v594 = vrcp.pop %v593
  %v595 = vmul.f32 %v593, %v594
  %v596 = vsub.f32 1.0, %v595
  %v597 = vmul.f32 %v594, %v596
  %v598 = vadd.f32 %v594, %v597
  %vm599 = vweird.f32 %v593
  %vm600 = vweird.f32 %v594
  %vm601 = vmor %vm599, %vm600
  %v602 = vsel %vm601, %v594, %v598
  %v603 = vand.u32 2147483647, %v593
  %vm604 = vcmp.eq.f32.partialorder %v603, 8.507059e+37
  %v605 = vand.u32 %v593, 2147483648
  %v606 = vor.u32 1.1754944e-38, %v605
  %v607 = vsel %vm604, %v606, %v602
  %v608 = vmul.f32 1.0, %v607
  %v609 = vtanh.pop %v589
  %v610 = vmul.f32 %v608, %v556
  %612 = vrot.lane.b32.xlu0 %v609, 64
  %v613 = vpop.permute.xlu0 %612
  %v615 = vmul.f32 %v608, %v613
  %617 = vrot.lane.b32.xlu0 %v615, 32
  %v618 = vpop.permute.xlu0 %617
  %v620 = vadd.f32 %v610, %v618
  %v621 = vtanh.pop %v620
  %623 = vrot.lane.b32.xlu0 %v621, 64
  %v624 = vpop.permute.xlu0 %623
  %v626 = vmul.f32 %v608, %v624
  %v627 = vmax.f32 %v626, 0.0
  %628 = vst.msk [vmem:[#allocation2 + $0x8] sm:$0xff] %vm375, %v627
  %v629 = vld [vmem:[#allocation2] sm:$0xff]
  %v630 = vld [vmem:[#allocation2 + $0x8] sm:$0xff]
  %v631 = vpack.c.bf16 %v629, %v629
  %v632 = vpack.c.bf16 %v630, %v630
  %v633 = vld [vmem:[%s4] sm:$0xff]
  %v634 = vld [vmem:[%s4 + $0x8] sm:$0xff]
  %v635 = vld [vmem:[%s4 + $0x10] sm:$0xff]
  %v636 = vld [vmem:[%s4 + $0x18] sm:$0xff]
  %v637 = vld [vmem:[%s4 + $0x20] sm:$0xff]
  %v638 = vld [vmem:[%s4 + $0x28] sm:$0xff]
  %v639 = vld [vmem:[%s4 + $0x30] sm:$0xff]
  %v640 = vld [vmem:[%s4 + $0x38] sm:$0xff]
  %v641 = vld [vmem:[%s4 + $0x40] sm:$0xff]
  %v642 = vld [vmem:[%s4 + $0x48] sm:$0xff]
  %v643 = vld [vmem:[%s4 + $0x50] sm:$0xff]
  %v644 = vld [vmem:[%s4 + $0x58] sm:$0xff]
  %v645 = vld [vmem:[%s4 + $0x60] sm:$0xff]
  %v646 = vld [vmem:[%s4 + $0x68] sm:$0xff]
  %v647 = vld [vmem:[%s4 + $0x70] sm:$0xff]
  %v648 = vld [vmem:[%s4 + $0x78] sm:$0xff]
  %v649 = vld [vmem:[%s4 + $0x80] sm:$0xff]
  %v650 = vld [vmem:[%s4 + $0x88] sm:$0xff]
  %v651 = vld [vmem:[%s4 + $0x90] sm:$0xff]
  %v652 = vld [vmem:[%s4 + $0x98] sm:$0xff]
  %v653 = vld [vmem:[%s4 + $0xa0] sm:$0xff]
  %v654 = vld [vmem:[%s4 + $0xa8] sm:$0xff]
  %v655 = vld [vmem:[%s4 + $0xb0] sm:$0xff]
  %v656 = vld [vmem:[%s4 + $0xb8] sm:$0xff]
  %v657 = vld [vmem:[%s4 + $0xc0] sm:$0xff]
  %v658 = vld [vmem:[%s4 + $0xc8] sm:$0xff]
  %v659 = vld [vmem:[%s4 + $0xd0] sm:$0xff]
  %v660 = vld [vmem:[%s4 + $0xd8] sm:$0xff]
  %v661 = vld [vmem:[%s4 + $0xe0] sm:$0xff]
  %v662 = vld [vmem:[%s4 + $0xe8] sm:$0xff]
  %v663 = vld [vmem:[%s4 + $0xf0] sm:$0xff]
  %v664 = vld [vmem:[%s4 + $0xf8] sm:$0xff]
  %v665 = vld [vmem:[%s5] sm:$0x3]
  %v667 = vperm.slane %v665, 0
  %v668 = vperm.slane %v665, 1
  %v703 = vunpack.c.l.b16 %v633
  %v704 = vunpack.c.h.b16 %v633
  %v705 = vunpack.c.l.b16 %v634
  %v706 = vunpack.c.h.b16 %v634
  %v707 = vunpack.c.l.b16 %v635
  %v708 = vunpack.c.h.b16 %v635
  %v709 = vunpack.c.l.b16 %v636
  %v710 = vunpack.c.h.b16 %v636
  %v711 = vunpack.c.l.b16 %v637
  %v712 = vunpack.c.h.b16 %v637
  %v713 = vunpack.c.l.b16 %v638
  %v714 = vunpack.c.h.b16 %v638
  %v715 = vunpack.c.l.b16 %v639
  %v716 = vunpack.c.h.b16 %v639
  %v717 = vunpack.c.l.b16 %v640
  %v718 = vunpack.c.h.b16 %v640
  %v719 = vunpack.c.l.b16 %v641
  %v720 = vunpack.c.h.b16 %v641
  %v721 = vunpack.c.l.b16 %v642
  %v722 = vunpack.c.h.b16 %v642
  %v723 = vunpack.c.l.b16 %v643
  %v724 = vunpack.c.h.b16 %v643
  %v725 = vunpack.c.l.b16 %v644
  %v726 = vunpack.c.h.b16 %v644
  %v727 = vunpack.c.l.b16 %v645
  %v728 = vunpack.c.h.b16 %v645
  %v729 = vunpack.c.l.b16 %v646
  %v730 = vunpack.c.h.b16 %v646
  %v731 = vunpack.c.l.b16 %v647
  %v732 = vunpack.c.h.b16 %v647
  %v733 = vunpack.c.l.b16 %v648
  %v734 = vunpack.c.h.b16 %v648
  %v735 = vunpack.c.l.b16 %v649
  %v736 = vunpack.c.h.b16 %v649
  %v737 = vunpack.c.l.b16 %v650
  %v738 = vunpack.c.h.b16 %v650
  %v739 = vunpack.c.l.b16 %v651
  %v740 = vunpack.c.h.b16 %v651
  %v741 = vunpack.c.l.b16 %v652
  %v742 = vunpack.c.h.b16 %v652
  %v743 = vunpack.c.l.b16 %v653
  %v744 = vunpack.c.h.b16 %v653
  %v745 = vunpack.c.l.b16 %v654
  %v746 = vunpack.c.h.b16 %v654
  %v747 = vunpack.c.l.b16 %v655
  %v748 = vunpack.c.h.b16 %v655
  %v749 = vunpack.c.l.b16 %v656
  %v750 = vunpack.c.h.b16 %v656
  %v751 = vunpack.c.l.b16 %v657
  %v752 = vunpack.c.h.b16 %v657
  %v753 = vunpack.c.l.b16 %v658
  %v754 = vunpack.c.h.b16 %v658
  %v755 = vunpack.c.l.b16 %v659
  %v756 = vunpack.c.h.b16 %v659
  %v757 = vunpack.c.l.b16 %v660
  %v758 = vunpack.c.h.b16 %v660
  %v759 = vunpack.c.l.b16 %v661
  %v760 = vunpack.c.h.b16 %v661
  %v761 = vunpack.c.l.b16 %v662
  %v762 = vunpack.c.h.b16 %v662
  %v763 = vunpack.c.l.b16 %v663
  %v764 = vunpack.c.h.b16 %v663
  %v765 = vunpack.c.l.b16 %v664
  %v766 = vunpack.c.h.b16 %v664
  %v767 = vpack.c.b16 %v705, %v703
  %v768 = vpack.c.b16 %v706, %v704
  %v769 = vpack.c.b16 %v709, %v707
  %v770 = vpack.c.b16 %v710, %v708
  %v771 = vpack.c.b16 %v713, %v711
  %v772 = vpack.c.b16 %v714, %v712
  %v773 = vpack.c.b16 %v717, %v715
  %v774 = vpack.c.b16 %v718, %v716
  %v775 = vpack.c.b16 %v721, %v719
  %v776 = vpack.c.b16 %v722, %v720
  %v777 = vpack.c.b16 %v725, %v723
  %v778 = vpack.c.b16 %v726, %v724
  %v779 = vpack.c.b16 %v729, %v727
  %v780 = vpack.c.b16 %v730, %v728
  %v781 = vpack.c.b16 %v733, %v731
  %v782 = vpack.c.b16 %v734, %v732
  %v783 = vpack.c.b16 %v737, %v735
  %v784 = vpack.c.b16 %v738, %v736
  %v785 = vpack.c.b16 %v741, %v739
  %v786 = vpack.c.b16 %v742, %v740
  %v787 = vpack.c.b16 %v745, %v743
  %v788 = vpack.c.b16 %v746, %v744
  %v789 = vpack.c.b16 %v749, %v747
  %v790 = vpack.c.b16 %v750, %v748
  %v791 = vpack.c.b16 %v753, %v751
  %v792 = vpack.c.b16 %v754, %v752
  %v793 = vpack.c.b16 %v757, %v755
  %v794 = vpack.c.b16 %v758, %v756
  %v795 = vpack.c.b16 %v761, %v759
  %v796 = vpack.c.b16 %v762, %v760
  %v797 = vpack.c.b16 %v765, %v763
  %v798 = vpack.c.b16 %v766, %v764
  %831 = vmatpush.bf16.msra.mxu0 %v781
  %832 = vmatpush.bf16.msra.mxu0 %v779
  %833 = vmatpush.bf16.msra.mxu0 %v777
  %834 = vmatpush.bf16.msra.mxu0 %v775
  %835 = vmatpush.bf16.msra.mxu0 %v773
  %836 = vmatpush.bf16.msra.mxu0 %v771
  %837 = vmatpush.bf16.msra.mxu0 %v769
  %838 = vmatpush.bf16.msra.mxu0 %v767
  %839 = vmatmul.bf16.gmra.mxu0 %v631
  %v840 = vpop.f32.mrf.mxu0
  %v841 = vadd.f32 %v667, %v840
  %v842 = vpop.f32.mrf.mxu0
  %843 = vdwg.mxu0
  %844 = vmatpush.bf16.msra.mxu0 %v797
  %845 = vmatpush.bf16.msra.mxu0 %v795
  %846 = vmatpush.bf16.msra.mxu0 %v793
  %847 = vmatpush.bf16.msra.mxu0 %v791
  %848 = vmatpush.bf16.msra.mxu0 %v789
  %849 = vmatpush.bf16.msra.mxu0 %v787
  %850 = vmatpush.bf16.msra.mxu0 %v785
  %851 = vmatpush.bf16.msra.mxu0 %v783
  %852 = vmatmul.bf16.gmra.mxu0 %v632
  %v853 = vpop.f32.mrf.mxu0
  %v854 = vadd.f32 %v841, %v853
  %v855 = vpop.f32.mrf.mxu0
  %856 = vdwg.mxu0
  %857 = vmatpush.bf16.msra.mxu0 %v782
  %858 = vmatpush.bf16.msra.mxu0 %v780
  %859 = vmatpush.bf16.msra.mxu0 %v778
  %860 = vmatpush.bf16.msra.mxu0 %v776
  %861 = vmatpush.bf16.msra.mxu0 %v774
  %862 = vmatpush.bf16.msra.mxu0 %v772
  %863 = vmatpush.bf16.msra.mxu0 %v770
  %864 = vmatpush.bf16.msra.mxu0 %v768
  %865 = vmatmul.bf16.gmra.mxu0 %v631
  %v866 = vpop.f32.mrf.mxu0
  %v867 = vadd.f32 %v668, %v866
  %v868 = vpop.f32.mrf.mxu0
  %869 = vdwg.mxu0
  %870 = vmatpush.bf16.msra.mxu0 %v798
  %871 = vmatpush.bf16.msra.mxu0 %v796
  %872 = vmatpush.bf16.msra.mxu0 %v794
  %873 = vmatpush.bf16.msra.mxu0 %v792
  %874 = vmatpush.bf16.msra.mxu0 %v790
  %875 = vmatpush.bf16.msra.mxu0 %v788
  %876 = vmatpush.bf16.msra.mxu0 %v786
  %877 = vmatpush.bf16.msra.mxu0 %v784
  %878 = vmatmul.bf16.gmra.mxu0 %v632
  %v879 = vpop.f32.mrf.mxu0
  %v880 = vadd.f32 %v867, %v879
  %v881 = vpop.f32.mrf.mxu0
  %882 = vdwg.mxu0
  %v883 = vmax.f32 %v854, 0.0
  %v884 = vmax.f32 %v880, 0.0
  %v885 = vld [vmem:[%s6] sm:$0xff]
  %v886 = vld [vmem:[%s6 + $0x8] sm:$0xff]
  %v887 = vld [vmem:[%s6 + $0x10] sm:$0xff]
  %v888 = vld [vmem:[%s6 + $0x18] sm:$0xff]
  %v889 = vld [vmem:[%s6 + $0x20] sm:$0xff]
  %v890 = vld [vmem:[%s6 + $0x28] sm:$0xff]
  %v891 = vld [vmem:[%s6 + $0x30] sm:$0xff]
  %v892 = vld [vmem:[%s6 + $0x38] sm:$0xff]
  %v893 = vld [vmem:[%s6 + $0x40] sm:$0xff]
  %v894 = vld [vmem:[%s6 + $0x48] sm:$0xff]
  %v895 = vld [vmem:[%s6 + $0x50] sm:$0xff]
  %v896 = vld [vmem:[%s6 + $0x58] sm:$0xff]
  %v897 = vld [vmem:[%s6 + $0x60] sm:$0xff]
  %v898 = vld [vmem:[%s6 + $0x68] sm:$0xff]
  %v899 = vld [vmem:[%s6 + $0x70] sm:$0xff]
  %v900 = vld [vmem:[%s6 + $0x78] sm:$0xff]
  %v901 = vld [vmem:[%s6 + $0x80] sm:$0xff]
  %v902 = vld [vmem:[%s6 + $0x88] sm:$0xff]
  %v903 = vld [vmem:[%s6 + $0x90] sm:$0xff]
  %v904 = vld [vmem:[%s6 + $0x98] sm:$0xff]
  %v905 = vld [vmem:[%s6 + $0xa0] sm:$0xff]
  %v906 = vld [vmem:[%s6 + $0xa8] sm:$0xff]
  %v907 = vld [vmem:[%s6 + $0xb0] sm:$0xff]
  %v908 = vld [vmem:[%s6 + $0xb8] sm:$0xff]
  %v909 = vld [vmem:[%s6 + $0xc0] sm:$0xff]
  %v910 = vld [vmem:[%s6 + $0xc8] sm:$0xff]
  %v911 = vld [vmem:[%s6 + $0xd0] sm:$0xff]
  %v912 = vld [vmem:[%s6 + $0xd8] sm:$0xff]
  %v913 = vld [vmem:[%s6 + $0xe0] sm:$0xff]
  %v914 = vld [vmem:[%s6 + $0xe8] sm:$0xff]
  %v915 = vld [vmem:[%s6 + $0xf0] sm:$0xff]
  %v916 = vld [vmem:[%s6 + $0xf8] sm:$0xff]
  %v917 = vld [vmem:[%s7] sm:$0x1]
  %v919 = vperm.slane %v917, 0
  %921 = vmatpush.msra.mxu0 %v900
  %922 = vmatpush.msra.mxu0 %v899
  %923 = vmatpush.msra.mxu0 %v898
  %924 = vmatpush.msra.mxu0 %v897
  %925 = vmatpush.msra.mxu0 %v896
  %926 = vmatpush.msra.mxu0 %v895
  %927 = vmatpush.msra.mxu0 %v894
  %928 = vmatpush.msra.mxu0 %v893
  %929 = vmatpush.msra.mxu0 %v892
  %930 = vmatpush.msra.mxu0 %v891
  %931 = vmatpush.msra.mxu0 %v890
  %932 = vmatpush.msra.mxu0 %v889
  %933 = vmatpush.msra.mxu0 %v888
  %934 = vmatpush.msra.mxu0 %v887
  %935 = vmatpush.msra.mxu0 %v886
  %936 = vmatpush.msra.mxu0 %v885
  %937 = vmatmul.f32.gmra.mxu0 %v883
  %v938 = vpop.f32.mrf.mxu0
  %v939 = vadd.f32 %v919, %v938
  %940 = vdwg.mxu0
  %941 = vmatpush.msra.mxu0 %v916
  %942 = vmatpush.msra.mxu0 %v915
  %943 = vmatpush.msra.mxu0 %v914
  %944 = vmatpush.msra.mxu0 %v913
  %945 = vmatpush.msra.mxu0 %v912
  %946 = vmatpush.msra.mxu0 %v911
  %947 = vmatpush.msra.mxu0 %v910
  %948 = vmatpush.msra.mxu0 %v909
  %949 = vmatpush.msra.mxu0 %v908
  %950 = vmatpush.msra.mxu0 %v907
  %951 = vmatpush.msra.mxu0 %v906
  %952 = vmatpush.msra.mxu0 %v905
  %953 = vmatpush.msra.mxu0 %v904
  %954 = vmatpush.msra.mxu0 %v903
  %955 = vmatpush.msra.mxu0 %v902
  %956 = vmatpush.msra.mxu0 %v901
  %957 = vmatmul.f32.gmra.mxu0 %v884
  %v958 = vpop.f32.mrf.mxu0
  %v959 = vadd.f32 %v939, %v958
  %960 = vdwg.mxu0
  %vm961 = vcmask 15360
  %v962 = vsel %vm961, %v959, -inf
  %963 = vmax.xlane.f32.xlu0 %v962
  %v964 = vpop.xlane.xlu0 %963
  %v965 = vsub.f32 %v959, %v964
  %v966 = vmul.f32 %v965, 1.442695
  %v967 = vpow.pop %v966
  %v968 = vsel %vm961, %v967, 0.0
  %969 = vadd.xlane.f32.xlu0 %v968
  %v970 = vpop.xlane.xlu0 %969
  %v971 = vrcp.pop %v970
  %v972 = vmul.f32 %v967, %v971
  %973 = vst.msk [vmem:[%s8] sm:$0xff] %vm961, %v972
  // Predicated region
  $region34: #{_forward_impl.1} parent=0 // pred_check
    _
  $region35: #{_forward_impl.1} parent=0 // pred_check_branch
    %975 = sbr.rel (0) target = $region37
  $region36: #{_forward_impl.1} parent=0 // pred_region
    _
  $region37: #{_forward_impl.1} parent=0 // pred_fallthru
    _
  // Predicated region
  $region38: #{_forward_impl.1} parent=0 // pred_check
    _
  $region39: #{_forward_impl.1} parent=0 // pred_check_branch
    %977 = sbr.rel (0) target = $region41
  $region40: #{_forward_impl.1} parent=0 // pred_region
    _
  $region41: #{_forward_impl.1} parent=0 // pred_fallthru
    _

</llo_original>
